<compile_context>
chip_gen: v7x
topology: tpu7x:2x2x1
jax: 0.10.0
libtpu: 0.0.40
codegen_flags: <defaults>
</compile_context>

<pallas_src>
import functools

import jax
import jax.numpy as jnp
import numpy as np
from jax.experimental import pallas as pl
from jax.experimental.pallas import tpu as pltpu

_VMEM_LIMIT_BYTES = 32 * 1024 * 1024   # safe on v5e/v6e/v7x, ample for the blocks below
_ROW_ALIGN = 32                        # uint8 native VMEM tile is (32, 128)
_PIX_PER_ROW = 128                     # pixels folded into each lane-dense input row


def _cdiv(a, b):
    return -(-a // b)


def _round_up(a, b):
    return _cdiv(a, b) * b


# ----------------------------------------------------------------------------- kernels
def _deinterleave_kernel(x_ref, s_ref, o_ref, *, channels, scale):
    """Permute (T,H,W,C)->(C,T,H,W) + uint8->f32 cast (+ optional /255).

    x_ref: (tr, 128*C) uint8  -- 128 pixels per row, channels interleaved along lanes
    s_ref: (128*C, 128*C) bf16 -- constant 0/1 selection matrix
    o_ref: (C, tr, 128) f32    -- channel-separated output block
    """
    K = _PIX_PER_ROW
    # uint8 values 0..255 are exact in bf16; go via f32 (both converts are cheap VPU ops).
    x = x_ref[...].astype(jnp.float32).astype(jnp.bfloat16)
    # MXU de-interleave: y[r, c*K + k] = x[r, k*C + c]; exactly one nonzero term per
    # output element, accumulated in f32 -> bit exact.  No XLU transpose needed.
    y = jnp.dot(x, s_ref[...], preferred_element_type=jnp.float32)
    for c in range(channels):
        yc = y[:, c * K:(c + 1) * K]              # static, 128-aligned lane slice
        if scale != 1.0:                          # skip the multiply when normalize=False
            yc = yc * jnp.float32(scale)
        o_ref[c, :, :] = yc


def _cast_scale_kernel(x_ref, o_ref, *, scale):
    """transpose=False path: uint8->f32 cast (+ optional /255) on lane-dense tiles."""
    y = x_ref[...].astype(jnp.float32)
    if scale != 1.0:
        y = y * jnp.float32(scale)
    o_ref[...] = y


# ----------------------------------------------------------------------------- wrapper
def _to_lane_dense_rows(flat, n_valid, lane_width, tile_rows):
    """Fold a flat uint8 buffer into a lane-dense (rows, lane_width) array whose row
    count is an exact multiple of the row tile (zero-padding the ragged tail)."""
    rows = _cdiv(n_valid, lane_width)
    if rows <= tile_rows:
        tr = _round_up(max(rows, 1), _ROW_ALIGN)
        rows_pad = tr
    else:
        tr = tile_rows
        rows_pad = _round_up(rows, tr)
    n_pad = rows_pad * lane_width
    if n_pad != n_valid:
        flat = jnp.pad(flat, (0, n_pad - n_valid))
    return flat.reshape(rows_pad, lane_width), tr, rows_pad, n_pad != n_valid


def video_tensor_transform(clip, *, transpose=True, dims=(3, 0, 1, 2),
                           normalize=False, tile_rows=2048):
    """Pallas equivalent of VideoTensorTransform.forward for uint8 video clips."""
    if clip.dtype != jnp.uint8:
        # TODO(synk): the module only casts ByteTensors; non-uint8 inputs would need a
        # different (non-MXU) de-interleave to stay exact and are not implemented here.
        raise NotImplementedError("only uint8 (ByteTensor) clips are supported")

    scale = (1.0 / 255.0) if normalize else 1.0
    tile_rows = _round_up(max(tile_rows, _ROW_ALIGN), _ROW_ALIGN)
    compiler_params = pltpu.CompilerParams(
        dimension_semantics=("parallel",),
        vmem_limit_bytes=_VMEM_LIMIT_BYTES)

    if not transpose:
        shape = clip.shape
        n = int(np.prod(shape))
        lanes = 512
        x2d, tr, rows_pad, padded = _to_lane_dense_rows(
            clip.reshape(-1), n, lanes, tile_rows)
        out2d = pl.pallas_call(
            functools.partial(_cast_scale_kernel, scale=scale),
            out_shape=jax.ShapeDtypeStruct((rows_pad, lanes), jnp.float32),
            grid=(rows_pad // tr,),
            in_specs=[pl.BlockSpec((tr, lanes), lambda i: (i, 0))],
            out_specs=pl.BlockSpec((tr, lanes), lambda i: (i, 0)),
            compiler_params=compiler_params,
        )(x2d)
        flat = out2d.reshape(-1)
        if padded:
            flat = flat[:n]
        return flat.reshape(shape)

    if tuple(dims) != (3, 0, 1, 2):
        # TODO(synk): only the module's default permutation (3, 0, 1, 2) is implemented.
        raise NotImplementedError("only dims=(3, 0, 1, 2) is supported")

    T, H, W, C = clip.shape
    if C > 8:
        # TODO(synk): very wide channel counts would make the selection matmul
        # compute-bound; not needed for video clips (C in {1, 3, 4}).
        raise NotImplementedError("channel counts > 8 are not supported")

    N = T * H * W                         # number of pixels
    K = _PIX_PER_ROW
    lanes = C * K                         # lane-dense input row width (384 for RGB)

    x2d, tr, rows_pad, padded = _to_lane_dense_rows(
        clip.reshape(-1), N * C, lanes, tile_rows)

    # Constant 0/1 selection matrix: (x @ sel)[r, c*K + k] == x[r, k*C + c].
    sel = np.zeros((lanes, lanes), dtype=np.float32)
    k = np.arange(K)
    for c in range(C):
        sel[k * C + c, c * K + k] = 1.0
    sel = jnp.asarray(sel, dtype=jnp.bfloat16)

    out3 = pl.pallas_call(
        functools.partial(_deinterleave_kernel, channels=C, scale=scale),
        out_shape=jax.ShapeDtypeStruct((C, rows_pad, K), jnp.float32),
        grid=(rows_pad // tr,),
        in_specs=[pl.BlockSpec((tr, lanes), lambda i: (i, 0)),
                  pl.BlockSpec((lanes, lanes), lambda i: (0, 0))],
        out_specs=pl.BlockSpec((C, tr, K), lambda i: (0, i, 0)),
        compiler_params=compiler_params,
    )(x2d, sel)

    # (C, rows_pad, 128) -> (C, T*H*W) -> (C, T, H, W): contiguous reshapes (+ slice
    # only when the tail was padded).
    out = out3.reshape(C, rows_pad * K)
    if padded:
        out = out[:, :N]
    return out.reshape(C, T, H, W)


if __name__ == "__main__":
    key = jax.random.PRNGKey(0)

    # Small clip: 8 RGB frames of 16x16, (T, H, W, C) uint8.
    T, H, W, C = 8, 16, 16, 3
    clip = jax.random.randint(key, (T, H, W, C), 0, 256,
                              dtype=jnp.int32).astype(jnp.uint8)

    # (1) normalize=True: permute + uint8->f32 + /255
    out = jax.block_until_ready(
        video_tensor_transform(clip, transpose=True, normalize=True))
    ref = jnp.transpose(clip, (3, 0, 1, 2)).astype(jnp.float32) / 255.0
    assert out.shape == (C, T, H, W) and out.dtype == jnp.float32
    np.testing.assert_allclose(np.asarray(out), np.asarray(ref),
                               rtol=1e-6, atol=1e-7)

    # (2) default path: permute + uint8->f32 (ByteTensor cast), no normalize
    out2 = jax.block_until_ready(video_tensor_transform(clip))
    ref2 = jnp.transpose(clip, (3, 0, 1, 2)).astype(jnp.float32)
    np.testing.assert_allclose(np.asarray(out2), np.asarray(ref2),
                               rtol=1e-6, atol=1e-6)

    # (3) ragged shape (T*H*W not a multiple of 128) exercises the padded-tail path
    clip3 = jax.random.randint(jax.random.PRNGKey(1), (3, 10, 10, 3), 0, 256,
                               dtype=jnp.int32).astype(jnp.uint8)
    out3 = jax.block_until_ready(video_tensor_transform(clip3, normalize=True))
    ref3 = jnp.transpose(clip3, (3, 0, 1, 2)).astype(jnp.float32) / 255.0
    np.testing.assert_allclose(np.asarray(out3), np.asarray(ref3),
                               rtol=1e-6, atol=1e-7)

    # (4) transpose=False path: tiled lane-dense cast + /255 only
    out4 = jax.block_until_ready(
        video_tensor_transform(clip, transpose=False, normalize=True))
    ref4 = clip.astype(jnp.float32) / 255.0
    np.testing.assert_allclose(np.asarray(out4), np.asarray(ref4),
                               rtol=1e-6, atol=1e-7)

    print("KERNEL_OK")
</pallas_src>

<mosaic_0001>
module attributes {stable_mosaic.version = 11 : i64} {
  func.func @_deinterleave_kernel(%arg0: i32, %arg1: memref<32x384xi8, #tpu.memory_space<vmem>>, %arg2: memref<384x384xbf16, #tpu.memory_space<vmem>>, %arg3: memref<3x32x128xf32, #tpu.memory_space<vmem>>) attributes {dimension_semantics = [#tpu.dimension_semantics<parallel>], iteration_bounds = array<i64: 1>, scalar_prefetch = 0 : i64, scratch_operands = 0 : i64, tpu.core_type = #tpu.core_type<tc>, window_params = [{transform_indices = @transform_0, window_bounds = array<i64: 32, 384>}, {pipeline_mode = #tpu.pipeline_mode<synchronous>, transform_indices = @transform_1, window_bounds = array<i64: 384, 384>}, {transform_indices = @transform_2, window_bounds = array<i64: 3, 32, 128>}]} {
    %c0 = arith.constant 0 : index
    %c0_0 = arith.constant 0 : index
    %0 = vector.load %arg1[%c0, %c0_0] : memref<32x384xi8, #tpu.memory_space<vmem>>, vector<32x384xi8>
    %1 = arith.uitofp %0 : vector<32x384xi8> to vector<32x384xf32>
    %2 = arith.truncf %1 : vector<32x384xf32> to vector<32x384xbf16>
    %c0_1 = arith.constant 0 : index
    %c0_2 = arith.constant 0 : index
    %3 = vector.load %arg2[%c0_1, %c0_2] : memref<384x384xbf16, #tpu.memory_space<vmem>>, vector<384x384xbf16>
    %cst = arith.constant dense<0.000000e+00> : vector<32x384xf32>
    %4 = tpu.matmul %2, %3, %cst {dimension_numbers = #tpu.dot_dimension_numbers<[1], [0], [0], [1], [0, 0, 1, 1], [], []>} : vector<32x384xbf16>, vector<384x384xbf16>, vector<32x384xf32> -> vector<32x384xf32>
    %5 = vector.extract_strided_slice %4 {offsets = [0, 0], sizes = [32, 128], strides = [1, 1]} : vector<32x384xf32> to vector<32x128xf32>
    %cst_3 = arith.constant 0.00392156886 : f32
    %6 = vector.broadcast %cst_3 : f32 to vector<32x128xf32>
    %7 = arith.mulf %5, %6 : vector<32x128xf32>
    %c0_4 = arith.constant 0 : index
    %c0_5 = arith.constant 0 : index
    %c0_6 = arith.constant 0 : index
    %8 = vector.load %arg3[%c0_4, %c0_5, %c0_6] : memref<3x32x128xf32, #tpu.memory_space<vmem>>, vector<1x32x128xf32>
    %9 = vector.shape_cast %8 : vector<1x32x128xf32> to vector<32x128xf32>
    %10 = vector.shape_cast %7 : vector<32x128xf32> to vector<1x32x128xf32>
    tpu.vector_store %arg3[%c0_4, %c0_5, %c0_6], %10 {strides = array<i32>} : memref<3x32x128xf32, #tpu.memory_space<vmem>>, vector<1x32x128xf32>,
    %11 = vector.extract_strided_slice %4 {offsets = [0, 128], sizes = [32, 128], strides = [1, 1]} : vector<32x384xf32> to vector<32x128xf32>
    %cst_7 = arith.constant 0.00392156886 : f32
    %12 = vector.broadcast %cst_7 : f32 to vector<32x128xf32>
    %13 = arith.mulf %11, %12 : vector<32x128xf32>
    %c1 = arith.constant 1 : index
    %c0_8 = arith.constant 0 : index
    %c0_9 = arith.constant 0 : index
    %14 = vector.load %arg3[%c1, %c0_8, %c0_9] : memref<3x32x128xf32, #tpu.memory_space<vmem>>, vector<1x32x128xf32>
    %15 = vector.shape_cast %14 : vector<1x32x128xf32> to vector<32x128xf32>
    %16 = vector.shape_cast %13 : vector<32x128xf32> to vector<1x32x128xf32>
    tpu.vector_store %arg3[%c1, %c0_8, %c0_9], %16 {strides = array<i32>} : memref<3x32x128xf32, #tpu.memory_space<vmem>>, vector<1x32x128xf32>,
    %17 = vector.extract_strided_slice %4 {offsets = [0, 256], sizes = [32, 128], strides = [1, 1]} : vector<32x384xf32> to vector<32x128xf32>
    %cst_10 = arith.constant 0.00392156886 : f32
    %18 = vector.broadcast %cst_10 : f32 to vector<32x128xf32>
    %19 = arith.mulf %17, %18 : vector<32x128xf32>
    %c2 = arith.constant 2 : index
    %c0_11 = arith.constant 0 : index
    %c0_12 = arith.constant 0 : index
    %20 = vector.load %arg3[%c2, %c0_11, %c0_12] : memref<3x32x128xf32, #tpu.memory_space<vmem>>, vector<1x32x128xf32>
    %21 = vector.shape_cast %20 : vector<1x32x128xf32> to vector<32x128xf32>
    %22 = vector.shape_cast %19 : vector<32x128xf32> to vector<1x32x128xf32>
    tpu.vector_store %arg3[%c2, %c0_11, %c0_12], %22 {strides = array<i32>} : memref<3x32x128xf32, #tpu.memory_space<vmem>>, vector<1x32x128xf32>,
    return
  }
  func.func @transform_0(%arg0: i32) -> (i32, i32) {
    %c0_i32 = arith.constant 0 : i32
    %c0_i32_0 = arith.constant 0 : i32
    return %arg0, %c0_i32 : i32, i32
  }
  func.func @transform_1(%arg0: i32) -> (i32, i32) {
    %c0_i32 = arith.constant 0 : i32
    %c0_i32_0 = arith.constant 0 : i32
    %c0_i32_1 = arith.constant 0 : i32
    return %c0_i32, %c0_i32_0 : i32, i32
  }
  func.func @transform_2(%arg0: i32) -> (i32, i32, i32) {
    %c0_i32 = arith.constant 0 : i32
    %c0_i32_0 = arith.constant 0 : i32
    %c0_i32_1 = arith.constant 0 : i32
    return %c0_i32, %arg0, %c0_i32_0 : i32, i32, i32
  }
}

</mosaic_0001>

<llo_original>
// kernel: tpu_custom_call.1
$region0: #{tpu_custom_call.1}
  #allocation0 [shape = 'u32[]', space=smem, size = 0x4, offset = 0x4, fixed_abs, tag = 'smem constant byte address 0x4 - core index']
  #allocation1 [shape = 'u32[144,128]{1,0:T(1,128)}', space=vmem, size = 0x12000, scoped, tag = 'internal scratch']
  %s0 = inlined_call_operand.hbm [shape: u8[32,384], index: 0, kind: input, shape index: {}]
  %s1 = inlined_call_operand.hbm [shape: bf16[384,384], index: 1, kind: input, shape index: {}]
  %s2 = inlined_call_operand.hbm [shape: f32[3,32,128], index: 2, kind: output, shape index: {}]
  %s3 = sld [smem:[#allocation0]]
  $region26: #{tpu_custom_call.1} parent=0
    _
  %s5 = ssub.s32 1, %s3
  %s6 = scalar_select 0, %s5, %s3
  $region1: #{tpu_custom_call.1} parent=0
    #allocation2 [shape = 'u8[12288]{0}', space=vmem, size = 0x3000, scoped, tag = 'input window, operand 0, single buffered']
    #allocation3 [shape = 's32[1]{0}', space=sflag, size = 0x4, scoped, tag = 'scoped memory for tpu_custom_call.1']
    #allocation4 [shape = 's32[1]{0}', space=sflag, size = 0x4, scoped, tag = 'scoped memory for tpu_custom_call.1']
    #allocation5 [shape = 'u8[294912]{0}', space=vmem, size = 0x48000, scoped, tag = 'input window, operand 1, single buffered']
    #allocation6 [shape = 's32[1]{0}', space=sflag, size = 0x4, scoped, tag = 'scoped memory for tpu_custom_call.1']
    #allocation7 [shape = 'u8[49152]{0}', space=vmem, size = 0xc000, scoped, tag = 'output window, operand 0, single buffered']
    %7 = vsyncpa [#allocation3], 0
    %8 = vsyncpa [#allocation6], 0
    %9 = vsyncpa [#allocation4], 0
    // Predicated region
    $region2: #{tpu_custom_call.1} parent=1 // pred_check
      _
    $region3: #{tpu_custom_call.1} parent=1 // pred_check_branch
      %11 = sbr.rel (0) target = $region5
    $region4: #{tpu_custom_call.1} parent=1 // pred_region
      %s13 = ssub.s32 384, 384
      %14 = vsyncadd [#allocation3], %s13
      %s16 = sshll.u32 [#allocation2], 4
      %s17 = int_to_ptr.vmem [resolvable:$true] %s16
      %19 = dma.hbm_to_vmem [thread:$0]  %s0, 384, %s17, [#allocation3]
    $region5: #{tpu_custom_call.1} parent=1 // pred_fallthru
      _
    // Predicated region
    $region6: #{tpu_custom_call.1} parent=1 // pred_check
      _
    $region7: #{tpu_custom_call.1} parent=1 // pred_check_branch
      %21 = sbr.rel (0) target = $region9
    $region8: #{tpu_custom_call.1} parent=1 // pred_region
      %s23 = ssub.s32 9216, 9216
      %24 = vsyncadd [#allocation6], %s23
      %s25 = sshll.u32 [#allocation5], 4
      %s26 = int_to_ptr.vmem [resolvable:$true] %s25
      %31 = dma.hbm_to_vmem [thread:$0]  %s1, 9216, %s26, [#allocation6], 192, 192, 12
    $region9: #{tpu_custom_call.1} parent=1 // pred_fallthru
      _
    // Predicated region
    $region10: #{tpu_custom_call.1} parent=1 // pred_check
      _
    $region11: #{tpu_custom_call.1} parent=1 // pred_check_branch
      %33 = sbr.rel (0) target = $region13
    $region12: #{tpu_custom_call.1} parent=1 // pred_region
      %34 = dma.done [#allocation3], 384
    $region13: #{tpu_custom_call.1} parent=1 // pred_fallthru
      _
    // Predicated region
    $region14: #{tpu_custom_call.1} parent=1 // pred_check
      _
    $region15: #{tpu_custom_call.1} parent=1 // pred_check_branch
      %36 = sbr.rel (0) target = $region17
    $region16: #{tpu_custom_call.1} parent=1 // pred_region
      %37 = dma.done [#allocation6], 9216
    $region17: #{tpu_custom_call.1} parent=1 // pred_fallthru
      _
    %v39 = vld [vmem:[#allocation2] sm:$0xff]
    %v40 = vld [vmem:[#allocation2 + $0x8] sm:$0xff]
    %v41 = vld [vmem:[#allocation2 + $0x10] sm:$0xff]
    %v42 = vunpack.c.l.u8.bf16 %v39
    %v43 = vunpack.c.l.u8.bf16 %v40
    %v44 = vunpack.c.l.u8.bf16 %v41
    %v45 = vunpack.c.h.u8.bf16 %v39
    %v46 = vunpack.c.h.u8.bf16 %v40
    %v47 = vunpack.c.h.u8.bf16 %v41
    %v48 = vld [vmem:[#allocation5] sm:$0xff]
    %v49 = vld [vmem:[#allocation5 + $0x8] sm:$0xf]
    %v50 = vld [vmem:[#allocation5 + $0xc] sm:$0xff]
    %v51 = vld [vmem:[#allocation5 + $0x14] sm:$0xf]
    %v52 = vld [vmem:[#allocation5 + $0x18] sm:$0xff]
    %v53 = vld [vmem:[#allocation5 + $0x20] sm:$0xf]
    %v54 = vld [vmem:[#allocation5 + $0x24] sm:$0xff]
    %v55 = vld [vmem:[#allocation5 + $0x2c] sm:$0xf]
    %v56 = vld [vmem:[#allocation5 + $0x30] sm:$0xff]
    %v57 = vld [vmem:[#allocation5 + $0x38] sm:$0xf]
    %v58 = vld [vmem:[#allocation5 + $0x3c] sm:$0xff]
    %v59 = vld [vmem:[#allocation5 + $0x44] sm:$0xf]
    %v60 = vld [vmem:[#allocation5 + $0x48] sm:$0xff]
    %v61 = vld [vmem:[#allocation5 + $0x50] sm:$0xf]
    %v62 = vld [vmem:[#allocation5 + $0x54] sm:$0xff]
    %v63 = vld [vmem:[#allocation5 + $0x5c] sm:$0xf]
    %v64 = vld [vmem:[#allocation5 + $0x60] sm:$0xff]
    %v65 = vld [vmem:[#allocation5 + $0x68] sm:$0xf]
    %v66 = vld [vmem:[#allocation5 + $0x6c] sm:$0xff]
    %v67 = vld [vmem:[#allocation5 + $0x74] sm:$0xf]
    %v68 = vld [vmem:[#allocation5 + $0x78] sm:$0xff]
    %v69 = vld [vmem:[#allocation5 + $0x80] sm:$0xf]
    %v70 = vld [vmem:[#allocation5 + $0x84] sm:$0xff]
    %v71 = vld [vmem:[#allocation5 + $0x8c] sm:$0xf]
    %v72 = vld [vmem:[#allocation5 + $0x90] sm:$0xff]
    %v73 = vld [vmem:[#allocation5 + $0x98] sm:$0xf]
    %v74 = vld [vmem:[#allocation5 + $0x9c] sm:$0xff]
    %v75 = vld [vmem:[#allocation5 + $0xa4] sm:$0xf]
    %v76 = vld [vmem:[#allocation5 + $0xa8] sm:$0xff]
    %v77 = vld [vmem:[#allocation5 + $0xb0] sm:$0xf]
    %v78 = vld [vmem:[#allocation5 + $0xb4] sm:$0xff]
    %v79 = vld [vmem:[#allocation5 + $0xbc] sm:$0xf]
    %v80 = vld [vmem:[#allocation5 + $0xc0] sm:$0xff]
    %v81 = vld [vmem:[#allocation5 + $0xc8] sm:$0xf]
    %v82 = vld [vmem:[#allocation5 + $0xcc] sm:$0xff]
    %v83 = vld [vmem:[#allocation5 + $0xd4] sm:$0xf]
    %v84 = vld [vmem:[#allocation5 + $0xd8] sm:$0xff]
    %v85 = vld [vmem:[#allocation5 + $0xe0] sm:$0xf]
    %v86 = vld [vmem:[#allocation5 + $0xe4] sm:$0xff]
    %v87 = vld [vmem:[#allocation5 + $0xec] sm:$0xf]
    %v88 = vld [vmem:[#allocation5 + $0xf0] sm:$0xff]
    %v89 = vld [vmem:[#allocation5 + $0xf8] sm:$0xf]
    %v90 = vld [vmem:[#allocation5 + $0xfc] sm:$0xff]
    %v91 = vld [vmem:[#allocation5 + $0x104] sm:$0xf]
    %v92 = vld [vmem:[#allocation5 + $0x108] sm:$0xff]
    %v93 = vld [vmem:[#allocation5 + $0x110] sm:$0xf]
    %v94 = vld [vmem:[#allocation5 + $0x114] sm:$0xff]
    %v95 = vld [vmem:[#allocation5 + $0x11c] sm:$0xf]
    %v96 = vld [vmem:[#allocation5 + $0x120] sm:$0xff]
    %v97 = vld [vmem:[#allocation5 + $0x128] sm:$0xf]
    %v98 = vld [vmem:[#allocation5 + $0x12c] sm:$0xff]
    %v99 = vld [vmem:[#allocation5 + $0x134] sm:$0xf]
    %v100 = vld [vmem:[#allocation5 + $0x138] sm:$0xff]
    %v101 = vld [vmem:[#allocation5 + $0x140] sm:$0xf]
    %v102 = vld [vmem:[#allocation5 + $0x144] sm:$0xff]
    %v103 = vld [vmem:[#allocation5 + $0x14c] sm:$0xf]
    %v104 = vld [vmem:[#allocation5 + $0x150] sm:$0xff]
    %v105 = vld [vmem:[#allocation5 + $0x158] sm:$0xf]
    %v106 = vld [vmem:[#allocation5 + $0x15c] sm:$0xff]
    %v107 = vld [vmem:[#allocation5 + $0x164] sm:$0xf]
    %v108 = vld [vmem:[#allocation5 + $0x168] sm:$0xff]
    %v109 = vld [vmem:[#allocation5 + $0x170] sm:$0xf]
    %v110 = vld [vmem:[#allocation5 + $0x174] sm:$0xff]
    %v111 = vld [vmem:[#allocation5 + $0x17c] sm:$0xf]
    %v112 = vld [vmem:[#allocation5 + $0x180] sm:$0xff]
    %v113 = vld [vmem:[#allocation5 + $0x188] sm:$0xf]
    %v114 = vld [vmem:[#allocation5 + $0x18c] sm:$0xff]
    %v115 = vld [vmem:[#allocation5 + $0x194] sm:$0xf]
    %v116 = vld [vmem:[#allocation5 + $0x198] sm:$0xff]
    %v117 = vld [vmem:[#allocation5 + $0x1a0] sm:$0xf]
    %v118 = vld [vmem:[#allocation5 + $0x1a4] sm:$0xff]
    %v119 = vld [vmem:[#allocation5 + $0x1ac] sm:$0xf]
    %v120 = vld [vmem:[#allocation5 + $0x1b0] sm:$0xff]
    %v121 = vld [vmem:[#allocation5 + $0x1b8] sm:$0xf]
    %v122 = vld [vmem:[#allocation5 + $0x1bc] sm:$0xff]
    %v123 = vld [vmem:[#allocation5 + $0x1c4] sm:$0xf]
    %v124 = vld [vmem:[#allocation5 + $0x1c8] sm:$0xff]
    %v125 = vld [vmem:[#allocation5 + $0x1d0] sm:$0xf]
    %v126 = vld [vmem:[#allocation5 + $0x1d4] sm:$0xff]
    %v127 = vld [vmem:[#allocation5 + $0x1dc] sm:$0xf]
    %v128 = vld [vmem:[#allocation5 + $0x1e0] sm:$0xff]
    %v129 = vld [vmem:[#allocation5 + $0x1e8] sm:$0xf]
    %v130 = vld [vmem:[#allocation5 + $0x1ec] sm:$0xff]
    %v131 = vld [vmem:[#allocation5 + $0x1f4] sm:$0xf]
    %v132 = vld [vmem:[#allocation5 + $0x1f8] sm:$0xff]
    %v133 = vld [vmem:[#allocation5 + $0x200] sm:$0xf]
    %v134 = vld [vmem:[#allocation5 + $0x204] sm:$0xff]
    %v135 = vld [vmem:[#allocation5 + $0x20c] sm:$0xf]
    %v136 = vld [vmem:[#allocation5 + $0x210] sm:$0xff]
    %v137 = vld [vmem:[#allocation5 + $0x218] sm:$0xf]
    %v138 = vld [vmem:[#allocation5 + $0x21c] sm:$0xff]
    %v139 = vld [vmem:[#allocation5 + $0x224] sm:$0xf]
    %v140 = vld [vmem:[#allocation5 + $0x228] sm:$0xff]
    %v141 = vld [vmem:[#allocation5 + $0x230] sm:$0xf]
    %v142 = vld [vmem:[#allocation5 + $0x234] sm:$0xff]
    %v143 = vld [vmem:[#allocation5 + $0x23c] sm:$0xf]
    %v240 = vunpack.c.l.b16 %v48
    %v241 = vunpack.c.h.b16 %v48
    %v242 = vunpack.c.l.b16 %v49
    %v243 = vunpack.c.l.b16 %v50
    %v244 = vunpack.c.h.b16 %v50
    %v245 = vunpack.c.l.b16 %v51
    %v246 = vunpack.c.l.b16 %v52
    %v247 = vunpack.c.h.b16 %v52
    %v248 = vunpack.c.l.b16 %v53
    %v249 = vunpack.c.l.b16 %v54
    %v250 = vunpack.c.h.b16 %v54
    %v251 = vunpack.c.l.b16 %v55
    %v252 = vunpack.c.l.b16 %v56
    %v253 = vunpack.c.h.b16 %v56
    %v254 = vunpack.c.l.b16 %v57
    %v255 = vunpack.c.l.b16 %v58
    %v256 = vunpack.c.h.b16 %v58
    %v257 = vunpack.c.l.b16 %v59
    %v258 = vunpack.c.l.b16 %v60
    %v259 = vunpack.c.h.b16 %v60
    %v260 = vunpack.c.l.b16 %v61
    %v261 = vunpack.c.l.b16 %v62
    %v262 = vunpack.c.h.b16 %v62
    %v263 = vunpack.c.l.b16 %v63
    %v264 = vunpack.c.l.b16 %v64
    %v265 = vunpack.c.h.b16 %v64
    %v266 = vunpack.c.l.b16 %v65
    %v267 = vunpack.c.l.b16 %v66
    %v268 = vunpack.c.h.b16 %v66
    %v269 = vunpack.c.l.b16 %v67
    %v270 = vunpack.c.l.b16 %v68
    %v271 = vunpack.c.h.b16 %v68
    %v272 = vunpack.c.l.b16 %v69
    %v273 = vunpack.c.l.b16 %v70
    %v274 = vunpack.c.h.b16 %v70
    %v275 = vunpack.c.l.b16 %v71
    %v276 = vunpack.c.l.b16 %v72
    %v277 = vunpack.c.h.b16 %v72
    %v278 = vunpack.c.l.b16 %v73
    %v279 = vunpack.c.l.b16 %v74
    %v280 = vunpack.c.h.b16 %v74
    %v281 = vunpack.c.l.b16 %v75
    %v282 = vunpack.c.l.b16 %v76
    %v283 = vunpack.c.h.b16 %v76
    %v284 = vunpack.c.l.b16 %v77
    %v285 = vunpack.c.l.b16 %v78
    %v286 = vunpack.c.h.b16 %v78
    %v287 = vunpack.c.l.b16 %v79
    %v288 = vunpack.c.l.b16 %v80
    %v289 = vunpack.c.h.b16 %v80
    %v290 = vunpack.c.l.b16 %v81
    %v291 = vunpack.c.l.b16 %v82
    %v292 = vunpack.c.h.b16 %v82
    %v293 = vunpack.c.l.b16 %v83
    %v294 = vunpack.c.l.b16 %v84
    %v295 = vunpack.c.h.b16 %v84
    %v296 = vunpack.c.l.b16 %v85
    %v297 = vunpack.c.l.b16 %v86
    %v298 = vunpack.c.h.b16 %v86
    %v299 = vunpack.c.l.b16 %v87
    %v300 = vunpack.c.l.b16 %v88
    %v301 = vunpack.c.h.b16 %v88
    %v302 = vunpack.c.l.b16 %v89
    %v303 = vunpack.c.l.b16 %v90
    %v304 = vunpack.c.h.b16 %v90
    %v305 = vunpack.c.l.b16 %v91
    %v306 = vunpack.c.l.b16 %v92
    %v307 = vunpack.c.h.b16 %v92
    %v308 = vunpack.c.l.b16 %v93
    %v309 = vunpack.c.l.b16 %v94
    %v310 = vunpack.c.h.b16 %v94
    %v311 = vunpack.c.l.b16 %v95
    %v312 = vunpack.c.l.b16 %v96
    %v313 = vunpack.c.h.b16 %v96
    %v314 = vunpack.c.l.b16 %v97
    %v315 = vunpack.c.l.b16 %v98
    %v316 = vunpack.c.h.b16 %v98
    %v317 = vunpack.c.l.b16 %v99
    %v318 = vunpack.c.l.b16 %v100
    %v319 = vunpack.c.h.b16 %v100
    %v320 = vunpack.c.l.b16 %v101
    %v321 = vunpack.c.l.b16 %v102
    %v322 = vunpack.c.h.b16 %v102
    %v323 = vunpack.c.l.b16 %v103
    %v324 = vunpack.c.l.b16 %v104
    %v325 = vunpack.c.h.b16 %v104
    %v326 = vunpack.c.l.b16 %v105
    %v327 = vunpack.c.l.b16 %v106
    %v328 = vunpack.c.h.b16 %v106
    %v329 = vunpack.c.l.b16 %v107
    %v330 = vunpack.c.l.b16 %v108
    %v331 = vunpack.c.h.b16 %v108
    %v332 = vunpack.c.l.b16 %v109
    %v333 = vunpack.c.l.b16 %v110
    %v334 = vunpack.c.h.b16 %v110
    %v335 = vunpack.c.l.b16 %v111
    %v336 = vunpack.c.l.b16 %v112
    %v337 = vunpack.c.h.b16 %v112
    %v338 = vunpack.c.l.b16 %v113
    %v339 = vunpack.c.l.b16 %v114
    %v340 = vunpack.c.h.b16 %v114
    %v341 = vunpack.c.l.b16 %v115
    %v342 = vunpack.c.l.b16 %v116
    %v343 = vunpack.c.h.b16 %v116
    %v344 = vunpack.c.l.b16 %v117
    %v345 = vunpack.c.l.b16 %v118
    %v346 = vunpack.c.h.b16 %v118
    %v347 = vunpack.c.l.b16 %v119
    %v348 = vunpack.c.l.b16 %v120
    %v349 = vunpack.c.h.b16 %v120
    %v350 = vunpack.c.l.b16 %v121
    %v351 = vunpack.c.l.b16 %v122
    %v352 = vunpack.c.h.b16 %v122
    %v353 = vunpack.c.l.b16 %v123
    %v354 = vunpack.c.l.b16 %v124
    %v355 = vunpack.c.h.b16 %v124
    %v356 = vunpack.c.l.b16 %v125
    %v357 = vunpack.c.l.b16 %v126
    %v358 = vunpack.c.h.b16 %v126
    %v359 = vunpack.c.l.b16 %v127
    %v360 = vunpack.c.l.b16 %v128
    %v361 = vunpack.c.h.b16 %v128
    %v362 = vunpack.c.l.b16 %v129
    %v363 = vunpack.c.l.b16 %v130
    %v364 = vunpack.c.h.b16 %v130
    %v365 = vunpack.c.l.b16 %v131
    %v366 = vunpack.c.l.b16 %v132
    %v367 = vunpack.c.h.b16 %v132
    %v368 = vunpack.c.l.b16 %v133
    %v369 = vunpack.c.l.b16 %v134
    %v370 = vunpack.c.h.b16 %v134
    %v371 = vunpack.c.l.b16 %v135
    %v372 = vunpack.c.l.b16 %v136
    %v373 = vunpack.c.h.b16 %v136
    %v374 = vunpack.c.l.b16 %v137
    %v375 = vunpack.c.l.b16 %v138
    %v376 = vunpack.c.h.b16 %v138
    %v377 = vunpack.c.l.b16 %v139
    %v378 = vunpack.c.l.b16 %v140
    %v379 = vunpack.c.h.b16 %v140
    %v380 = vunpack.c.l.b16 %v141
    %v381 = vunpack.c.l.b16 %v142
    %v382 = vunpack.c.h.b16 %v142
    %v383 = vunpack.c.l.b16 %v143
    %v384 = vpack.c.b16 %v243, %v240
    %v385 = vpack.c.b16 %v244, %v241
    %v386 = vpack.c.b16 %v245, %v242
    %v387 = vpack.c.b16 %v249, %v246
    %v388 = vpack.c.b16 %v250, %v247
    %v389 = vpack.c.b16 %v251, %v248
    %v390 = vpack.c.b16 %v255, %v252
    %v391 = vpack.c.b16 %v256, %v253
    %v392 = vpack.c.b16 %v257, %v254
    %v393 = vpack.c.b16 %v261, %v258
    %v394 = vpack.c.b16 %v262, %v259
    %v395 = vpack.c.b16 %v263, %v260
    %v396 = vpack.c.b16 %v267, %v264
    %v397 = vpack.c.b16 %v268, %v265
    %v398 = vpack.c.b16 %v269, %v266
    %v399 = vpack.c.b16 %v273, %v270
    %v400 = vpack.c.b16 %v274, %v271
    %v401 = vpack.c.b16 %v275, %v272
    %v402 = vpack.c.b16 %v279, %v276
    %v403 = vpack.c.b16 %v280, %v277
    %v404 = vpack.c.b16 %v281, %v278
    %v405 = vpack.c.b16 %v285, %v282
    %v406 = vpack.c.b16 %v286, %v283
    %v407 = vpack.c.b16 %v287, %v284
    %v408 = vpack.c.b16 %v291, %v288
    %v409 = vpack.c.b16 %v292, %v289
    %v410 = vpack.c.b16 %v293, %v290
    %v411 = vpack.c.b16 %v297, %v294
    %v412 = vpack.c.b16 %v298, %v295
    %v413 = vpack.c.b16 %v299, %v296
    %v414 = vpack.c.b16 %v303, %v300
    %v415 = vpack.c.b16 %v304, %v301
    %v416 = vpack.c.b16 %v305, %v302
    %v417 = vpack.c.b16 %v309, %v306
    %v418 = vpack.c.b16 %v310, %v307
    %v419 = vpack.c.b16 %v311, %v308
    %v420 = vpack.c.b16 %v315, %v312
    %v421 = vpack.c.b16 %v316, %v313
    %v422 = vpack.c.b16 %v317, %v314
    %v423 = vpack.c.b16 %v321, %v318
    %v424 = vpack.c.b16 %v322, %v319
    %v425 = vpack.c.b16 %v323, %v320
    %v426 = vpack.c.b16 %v327, %v324
    %v427 = vpack.c.b16 %v328, %v325
    %v428 = vpack.c.b16 %v329, %v326
    %v429 = vpack.c.b16 %v333, %v330
    %v430 = vpack.c.b16 %v334, %v331
    %v431 = vpack.c.b16 %v335, %v332
    %v432 = vpack.c.b16 %v339, %v336
    %v433 = vpack.c.b16 %v340, %v337
    %v434 = vpack.c.b16 %v341, %v338
    %v435 = vpack.c.b16 %v345, %v342
    %v436 = vpack.c.b16 %v346, %v343
    %v437 = vpack.c.b16 %v347, %v344
    %v438 = vpack.c.b16 %v351, %v348
    %v439 = vpack.c.b16 %v352, %v349
    %v440 = vpack.c.b16 %v353, %v350
    %v441 = vpack.c.b16 %v357, %v354
    %v442 = vpack.c.b16 %v358, %v355
    %v443 = vpack.c.b16 %v359, %v356
    %v444 = vpack.c.b16 %v363, %v360
    %v445 = vpack.c.b16 %v364, %v361
    %v446 = vpack.c.b16 %v365, %v362
    %v447 = vpack.c.b16 %v369, %v366
    %v448 = vpack.c.b16 %v370, %v367
    %v449 = vpack.c.b16 %v371, %v368
    %v450 = vpack.c.b16 %v375, %v372
    %v451 = vpack.c.b16 %v376, %v373
    %v452 = vpack.c.b16 %v377, %v374
    %v453 = vpack.c.b16 %v381, %v378
    %v454 = vpack.c.b16 %v382, %v379
    %v455 = vpack.c.b16 %v383, %v380
    %528 = vmatprep.subr.bf16.mxu0 %v385
    %529 = vmatpush1.bf16.msra.mxu0 %v384
    %530 = vmatprep.subr.bf16.mxu0 %v388
    %531 = vmatpush1.bf16.msra.mxu0 %v387
    %532 = vmatprep.subr.bf16.mxu0 %v391
    %533 = vmatpush1.bf16.msra.mxu0 %v390
    %534 = vmatprep.subr.bf16.mxu0 %v394
    %535 = vmatpush1.bf16.msra.mxu0 %v393
    %536 = vmatprep.subr.bf16.mxu0 %v397
    %537 = vmatpush1.bf16.msra.mxu0 %v396
    %538 = vmatprep.subr.bf16.mxu0 %v400
    %539 = vmatpush1.bf16.msra.mxu0 %v399
    %540 = vmatprep.subr.bf16.mxu0 %v403
    %541 = vmatpush1.bf16.msra.mxu0 %v402
    %542 = vmatprep.subr.bf16.mxu0 %v406
    %543 = vmatpush1.bf16.msra.mxu0 %v405
    %544 = vmatprep.subr.bf16.mxu0 %v409
    %545 = vmatpush1.bf16.msra.mxu0 %v408
    %546 = vmatprep.subr.bf16.mxu0 %v412
    %547 = vmatpush1.bf16.msra.mxu0 %v411
    %548 = vmatprep.subr.bf16.mxu0 %v415
    %549 = vmatpush1.bf16.msra.mxu0 %v414
    %550 = vmatprep.subr.bf16.mxu0 %v418
    %551 = vmatpush1.bf16.msra.mxu0 %v417
    %552 = vmatprep.subr.bf16.mxu0 %v421
    %553 = vmatpush1.bf16.msra.mxu0 %v420
    %554 = vmatprep.subr.bf16.mxu0 %v424
    %555 = vmatpush1.bf16.msra.mxu0 %v423
    %556 = vmatprep.subr.bf16.mxu0 %v427
    %557 = vmatpush1.bf16.msra.mxu0 %v426
    %558 = vmatprep.subr.bf16.mxu0 %v430
    %559 = vmatpush1.bf16.msra.mxu0 %v429
    %560 = vmatprep.mubr.bf16.mxu0 %v43
    %561 = vmatmul.mubr.bf16.gmra.mrb[0].mxu0 %v42
    %v562 = vpop.f32.mrb[0].mxu0
    %v563 = vadd.f32 0.0, %v562
    %v564 = vpop.f32.mrb[0].mxu0
    %v565 = vadd.f32 0.0, %v564
    %v566 = vpop.f32.mrb[0].mxu0
    %v567 = vadd.f32 0.0, %v566
    %v568 = vpop.f32.mrb[0].mxu0
    %v569 = vadd.f32 0.0, %v568
    %570 = vmatprep.mubr.bf16.mxu0 %v46
    %571 = vmatmul.mubr.bf16.gmra.mrb[0].mxu0 %v45
    %v572 = vpop.f32.mrb[0].mxu0
    %v573 = vadd.f32 0.0, %v572
    %v574 = vpop.f32.mrb[0].mxu0
    %v575 = vadd.f32 0.0, %v574
    %v576 = vpop.f32.mrb[0].mxu0
    %v577 = vadd.f32 0.0, %v576
    %v578 = vpop.f32.mrb[0].mxu0
    %v579 = vadd.f32 0.0, %v578
    %580 = vdwg.mxu0
    %581 = vmatprep.subr.bf16.mxu0 %v433
    %582 = vmatpush1.bf16.msra.mxu0 %v432
    %583 = vmatprep.subr.bf16.mxu0 %v436
    %584 = vmatpush1.bf16.msra.mxu0 %v435
    %585 = vmatprep.subr.bf16.mxu0 %v439
    %586 = vmatpush1.bf16.msra.mxu0 %v438
    %587 = vmatprep.subr.bf16.mxu0 %v442
    %588 = vmatpush1.bf16.msra.mxu0 %v441
    %589 = vmatprep.subr.bf16.mxu0 %v445
    %590 = vmatpush1.bf16.msra.mxu0 %v444
    %591 = vmatprep.subr.bf16.mxu0 %v448
    %592 = vmatpush1.bf16.msra.mxu0 %v447
    %593 = vmatprep.subr.bf16.mxu0 %v451
    %594 = vmatpush1.bf16.msra.mxu0 %v450
    %595 = vmatprep.subr.bf16.mxu0 %v454
    %596 = vmatpush1.bf16.msra.mxu0 %v453
    %597 = vmatprep.subr.bf16.mxu0 0
    %598 = vmatpush1.bf16.msra.mxu0 0
    %599 = vmatprep.subr.bf16.mxu0 0
    %600 = vmatpush1.bf16.msra.mxu0 0
    %601 = vmatprep.subr.bf16.mxu0 0
    %602 = vmatpush1.bf16.msra.mxu0 0
    %603 = vmatprep.subr.bf16.mxu0 0
    %604 = vmatpush1.bf16.msra.mxu0 0
    %605 = vmatprep.subr.bf16.mxu0 0
    %606 = vmatpush1.bf16.msra.mxu0 0
    %607 = vmatprep.subr.bf16.mxu0 0
    %608 = vmatpush1.bf16.msra.mxu0 0
    %609 = vmatprep.subr.bf16.mxu0 0
    %610 = vmatpush1.bf16.msra.mxu0 0
    %611 = vmatprep.subr.bf16.mxu0 0
    %612 = vmatpush1.bf16.msra.mxu0 0
    %613 = vmatprep.mubr.bf16.mxu0 0
    %614 = vmatmul.mubr.bf16.gmra.mrb[0].mxu0 %v44
    %v615 = vpop.f32.mrb[0].mxu0
    %v616 = vadd.f32 %v563, %v615
    %v617 = vpop.f32.mrb[0].mxu0
    %v618 = vadd.f32 %v565, %v617
    %v619 = vpop.f32.mrb[0].mxu0
    %v620 = vadd.f32 %v567, %v619
    %v621 = vpop.f32.mrb[0].mxu0
    %v622 = vadd.f32 %v569, %v621
    %623 = vmatprep.mubr.bf16.mxu0 0
    %624 = vmatmul.mubr.bf16.gmra.mrb[0].mxu0 %v47
    %v625 = vpop.f32.mrb[0].mxu0
    %v626 = vadd.f32 %v573, %v625
    %v627 = vpop.f32.mrb[0].mxu0
    %v628 = vadd.f32 %v575, %v627
    %v629 = vpop.f32.mrb[0].mxu0
    %v630 = vadd.f32 %v577, %v629
    %v631 = vpop.f32.mrb[0].mxu0
    %v632 = vadd.f32 %v579, %v631
    %633 = vdwg.mxu0
    %634 = vmatprep.subr.bf16.mxu0 0
    %635 = vmatpush1.bf16.msra.mxu0 %v386
    %636 = vmatprep.subr.bf16.mxu0 0
    %637 = vmatpush1.bf16.msra.mxu0 %v389
    %638 = vmatprep.subr.bf16.mxu0 0
    %639 = vmatpush1.bf16.msra.mxu0 %v392
    %640 = vmatprep.subr.bf16.mxu0 0
    %641 = vmatpush1.bf16.msra.mxu0 %v395
    %642 = vmatprep.subr.bf16.mxu0 0
    %643 = vmatpush1.bf16.msra.mxu0 %v398
    %644 = vmatprep.subr.bf16.mxu0 0
    %645 = vmatpush1.bf16.msra.mxu0 %v401
    %646 = vmatprep.subr.bf16.mxu0 0
    %647 = vmatpush1.bf16.msra.mxu0 %v404
    %648 = vmatprep.subr.bf16.mxu0 0
    %649 = vmatpush1.bf16.msra.mxu0 %v407
    %650 = vmatprep.subr.bf16.mxu0 0
    %651 = vmatpush1.bf16.msra.mxu0 %v410
    %652 = vmatprep.subr.bf16.mxu0 0
    %653 = vmatpush1.bf16.msra.mxu0 %v413
    %654 = vmatprep.subr.bf16.mxu0 0
    %655 = vmatpush1.bf16.msra.mxu0 %v416
    %656 = vmatprep.subr.bf16.mxu0 0
    %657 = vmatpush1.bf16.msra.mxu0 %v419
    %658 = vmatprep.subr.bf16.mxu0 0
    %659 = vmatpush1.bf16.msra.mxu0 %v422
    %660 = vmatprep.subr.bf16.mxu0 0
    %661 = vmatpush1.bf16.msra.mxu0 %v425
    %662 = vmatprep.subr.bf16.mxu0 0
    %663 = vmatpush1.bf16.msra.mxu0 %v428
    %664 = vmatprep.subr.bf16.mxu0 0
    %665 = vmatpush1.bf16.msra.mxu0 %v431
    %666 = vmatprep.mubr.bf16.mxu0 %v43
    %667 = vmatmul.mubr.bf16.gmra.mrb[0].mxu0 %v42
    %v668 = vpop.f32.mrb[0].mxu0
    %v669 = vadd.f32 0.0, %v668
    %v670 = vpop.f32.mrb[0].mxu0
    %v671 = vpop.f32.mrb[0].mxu0
    %v672 = vadd.f32 0.0, %v671
    %v673 = vpop.f32.mrb[0].mxu0
    %674 = vmatprep.mubr.bf16.mxu0 %v46
    %675 = vmatmul.mubr.bf16.gmra.mrb[0].mxu0 %v45
    %v676 = vpop.f32.mrb[0].mxu0
    %v677 = vadd.f32 0.0, %v676
    %v678 = vpop.f32.mrb[0].mxu0
    %v679 = vpop.f32.mrb[0].mxu0
    %v680 = vadd.f32 0.0, %v679
    %v681 = vpop.f32.mrb[0].mxu0
    %682 = vdwg.mxu0
    %683 = vmatprep.subr.bf16.mxu0 0
    %684 = vmatpush1.bf16.msra.mxu0 %v434
    %685 = vmatprep.subr.bf16.mxu0 0
    %686 = vmatpush1.bf16.msra.mxu0 %v437
    %687 = vmatprep.subr.bf16.mxu0 0
    %688 = vmatpush1.bf16.msra.mxu0 %v440
    %689 = vmatprep.subr.bf16.mxu0 0
    %690 = vmatpush1.bf16.msra.mxu0 %v443
    %691 = vmatprep.subr.bf16.mxu0 0
    %692 = vmatpush1.bf16.msra.mxu0 %v446
    %693 = vmatprep.subr.bf16.mxu0 0
    %694 = vmatpush1.bf16.msra.mxu0 %v449
    %695 = vmatprep.subr.bf16.mxu0 0
    %696 = vmatpush1.bf16.msra.mxu0 %v452
    %697 = vmatprep.subr.bf16.mxu0 0
    %698 = vmatpush1.bf16.msra.mxu0 %v455
    %699 = vmatprep.subr.bf16.mxu0 0
    %700 = vmatpush1.bf16.msra.mxu0 0
    %701 = vmatprep.subr.bf16.mxu0 0
    %702 = vmatpush1.bf16.msra.mxu0 0
    %703 = vmatprep.subr.bf16.mxu0 0
    %704 = vmatpush1.bf16.msra.mxu0 0
    %705 = vmatprep.subr.bf16.mxu0 0
    %706 = vmatpush1.bf16.msra.mxu0 0
    %707 = vmatprep.subr.bf16.mxu0 0
    %708 = vmatpush1.bf16.msra.mxu0 0
    %709 = vmatprep.subr.bf16.mxu0 0
    %710 = vmatpush1.bf16.msra.mxu0 0
    %711 = vmatprep.subr.bf16.mxu0 0
    %712 = vmatpush1.bf16.msra.mxu0 0
    %713 = vmatprep.subr.bf16.mxu0 0
    %714 = vmatpush1.bf16.msra.mxu0 0
    %715 = vmatprep.mubr.bf16.mxu0 0
    %716 = vmatmul.mubr.bf16.gmra.mrb[0].mxu0 %v44
    %v717 = vpop.f32.mrb[0].mxu0
    %v718 = vadd.f32 %v669, %v717
    %v719 = vpop.f32.mrb[0].mxu0
    %v720 = vpop.f32.mrb[0].mxu0
    %v721 = vadd.f32 %v672, %v720
    %v722 = vpop.f32.mrb[0].mxu0
    %723 = vmatprep.mubr.bf16.mxu0 0
    %724 = vmatmul.mubr.bf16.gmra.mrb[0].mxu0 %v47
    %v725 = vpop.f32.mrb[0].mxu0
    %v726 = vadd.f32 %v677, %v725
    %v727 = vpop.f32.mrb[0].mxu0
    %v728 = vpop.f32.mrb[0].mxu0
    %v729 = vadd.f32 %v680, %v728
    %v730 = vpop.f32.mrb[0].mxu0
    %731 = vdwg.mxu0
    %v732 = vmul.f32 %v616, 0.003921569
    %v733 = vmul.f32 %v620, 0.003921569
    %v734 = vmul.f32 %v626, 0.003921569
    %v735 = vmul.f32 %v630, 0.003921569
    %736 = vst [vmem:[#allocation7] sm:$0xff] %v732
    %737 = vst [vmem:[#allocation7 + $0x8] sm:$0xff] %v733
    %738 = vst [vmem:[#allocation7 + $0x10] sm:$0xff] %v734
    %739 = vst [vmem:[#allocation7 + $0x18] sm:$0xff] %v735
    %v740 = vmul.f32 %v618, 0.003921569
    %v741 = vmul.f32 %v622, 0.003921569
    %v742 = vmul.f32 %v628, 0.003921569
    %v743 = vmul.f32 %v632, 0.003921569
    %s744 = scalar_lea.vmem [#allocation7], 32
    %745 = vst [vmem:[%s744] sm:$0xff] %v740
    %746 = vst [vmem:[%s744 + $0x8] sm:$0xff] %v741
    %747 = vst [vmem:[%s744 + $0x10] sm:$0xff] %v742
    %748 = vst [vmem:[%s744 + $0x18] sm:$0xff] %v743
    %v749 = vmul.f32 %v718, 0.003921569
    %v750 = vmul.f32 %v721, 0.003921569
    %v751 = vmul.f32 %v726, 0.003921569
    %v752 = vmul.f32 %v729, 0.003921569
    %s753 = scalar_lea.vmem [#allocation7], 64
    %754 = vst [vmem:[%s753] sm:$0xff] %v749
    %755 = vst [vmem:[%s753 + $0x8] sm:$0xff] %v750
    %756 = vst [vmem:[%s753 + $0x10] sm:$0xff] %v751
    %757 = vst [vmem:[%s753 + $0x18] sm:$0xff] %v752
    // Predicated region
    $region18: #{tpu_custom_call.1} parent=1 // pred_check
      _
    $region19: #{tpu_custom_call.1} parent=1 // pred_check_branch
      %759 = sbr.rel (0) target = $region21
    $region20: #{tpu_custom_call.1} parent=1 // pred_region
      %s761 = ssub.s32 1536, 1536
      %762 = vsyncadd [#allocation4], %s761
      %s763 = sshll.u32 [#allocation7], 4
      %s764 = int_to_ptr.vmem [resolvable:$true] %s763
      %769 = dma.vmem_to_hbm [thread:$0]  %s764, 1536, %s2, [#allocation4], 128, 128, 8
    $region21: #{tpu_custom_call.1} parent=1 // pred_fallthru
      _
    // Predicated region
    $region22: #{tpu_custom_call.1} parent=1 // pred_check
      _
    $region23: #{tpu_custom_call.1} parent=1 // pred_check_branch
      %771 = sbr.rel (0) target = $region25
    $region24: #{tpu_custom_call.1} parent=1 // pred_region
      %772 = dma.done [#allocation4], 1536
    $region25: #{tpu_custom_call.1} parent=1 // pred_fallthru
      _
    %773 = vsyncpa [#allocation3], 1
    %774 = vsyncpa [#allocation6], 1
    %775 = vsyncpa [#allocation4], 1

</llo_original>
